<compile_context>
chip_gen: v6e
topology: v6e:2x2x1
jax: 0.10.0
libtpu: 0.0.40
codegen_flags: <defaults>
</compile_context>

<pallas_src>
import functools
import math

import numpy as np
import jax
import jax.numpy as jnp
from jax.experimental import pallas as pl
from jax.experimental.pallas import tpu as pltpu


# ----------------------------------------------------------------------------
# Parameter / matrix setup (host-side numpy, float64)
# ----------------------------------------------------------------------------
def freqt_matrix(in_order: int, out_order: int, alpha: float) -> np.ndarray:
    """Frequency-transform matrix A.T of shape (in_order+1, out_order+1).

    Mirrors diffsptk.modules.freqt.FrequencyTransform buffer construction.
    """
    L1 = in_order + 1
    L2 = out_order + 1
    beta = 1.0 - alpha * alpha
    A = np.zeros((L2, L1), dtype=np.float64)
    A[0, :] = alpha ** np.arange(L1, dtype=np.float64)
    if 1 < L2 and 1 < L1:
        A[1, 1:] = A[0, :-1] * beta * np.arange(1, L1, dtype=np.float64)
    for i in range(2, L2):
        i1 = i - 1
        for j in range(1, L1):
            j1 = j - 1
            A[i, j] = A[i1, j1] + alpha * (A[i, j1] - A[i1, j])
    return A.T  # (L1, L2)


def rfft_basis(half: int, fft_length: int, imag: bool) -> np.ndarray:
    """Real (cos) or imaginary (-sin) rfft basis, shape (L/2+1, L/2+1).

    Input cepstrum has L/2+1 taps and is zero padded to L before rfft,
    so only the first L/2+1 rows of the DFT matrix are needed.
    """
    k = np.arange(half + 1, dtype=np.float64)[:, None]
    n = np.arange(half + 1, dtype=np.float64)[None, :]
    ang = 2.0 * np.pi * k * n / fft_length
    return (-np.sin(ang)) if imag else np.cos(ang)


def _round_up(x: int, m: int) -> int:
    return ((x + m - 1) // m) * m


def _cdiv(a: int, b: int) -> int:
    return -(-a // b)


# Explicit scoped-VMEM limit: safe on every generation.
#   v5e: raises the 16 MiB scoped default so big tiles can double-buffer.
#   v6e: well below 128 MiB physical.
#   v7x: well inside the 64 MiB per-TensorCore VMEM.
_VMEM_LIMIT_BYTES = 48 << 20
# Budget for the pipelined block buffers + resident weight (headroom kept for
# compiler-internal scratch inside the limit above).
_BLOCK_VMEM_BUDGET_BYTES = 32 << 20
# Output-block byte target (measured HBM-DMA sweet spot is ~1-4 MiB).
_TARGET_OUT_BLOCK_BYTES = 4 << 20


def _choose_tile(batch: int, m1: int, k: int, out_itemsize: int,
                 *, target_out_bytes: int = _TARGET_OUT_BLOCK_BYTES,
                 budget_bytes: int = _BLOCK_VMEM_BUDGET_BYTES) -> int:
    """Pick the batch tile TB for the writeback-bound GEMM.

    * Output block targets ~target_out_bytes.
    * VMEM guard: 2*TB*(in_row + out_row) double-buffered blocks plus the
      (double-buffered) resident weight must fit in budget_bytes.
    * TB is a multiple of 8 (sublane) unless it covers the whole batch.
    * Prefers an even grid-step count (v7x megacore balance) by growing TB,
      never by shrinking it below the byte target.
    """
    if batch <= 8:
        return max(batch, 1)                     # full-array block

    per_row = 2 * (m1 * 4 + k * out_itemsize)    # double-buffered in + out rows
    fixed = 2 * m1 * k * 4                       # resident fused weight (x2 buffers)
    avail = budget_bytes - fixed
    max_rows = (avail // per_row) if avail > 0 else 8
    max_rows = max((max_rows // 8) * 8, 8)

    tb = _round_up(max(target_out_bytes // (k * out_itemsize), 8), 8)
    tb = max(min(tb, max_rows), 8)

    if tb >= batch:
        return batch                             # single full block, no ragged tail

    # v7x megacore: avoid an odd step count (1-tile tail imbalance) by growing
    # the tile slightly — only if it still fits the VMEM budget.
    steps = _cdiv(batch, tb)
    if steps >= 3 and steps % 2 == 1:
        tb2 = _round_up(_cdiv(batch, steps - 1), 8)
        if tb2 <= max_rows and _cdiv(batch, tb2) == steps - 1:
            tb = tb2
    return tb


# ----------------------------------------------------------------------------
# Pallas kernel: single fused GEMM + formatter epilogue
# ----------------------------------------------------------------------------
def _mgc2sp_kernel(mc_ref, w_ref, o_ref, *, use_exp):
    # Fused freqt + rfft(+scale): y = mc @ W (W already folds A, F and scale).
    y = jnp.dot(mc_ref[...], w_ref[...], preferred_element_type=jnp.float32)
    if use_exp:
        y = jnp.exp(y)   # EUP slot — co-issues with MXU / loads / stores
    o_ref[...] = y.astype(o_ref.dtype)


class MelGeneralizedCepstrumToSpectrum:
    """JAX/Pallas port of diffsptk MelGeneralizedCepstrumToSpectrum.

    out_dtype: output dtype. Keep float32 (default) for 'power'/'magnitude';
    bfloat16 is a good choice for 'db'/'log-magnitude'/'cycle'/'radian'/'degree'
    and roughly halves the dominant HBM-writeback cost.
    """

    def __init__(self, cep_order, fft_length, *, alpha=0.0, gamma=0.0,
                 norm=False, mul=False, n_fft=512, out_format="power",
                 out_dtype=jnp.float32):
        if not (cep_order >= 0 and fft_length >= 2 and -1.0 < alpha < 1.0):
            raise ValueError("invalid parameters")
        if gamma != 0.0 or norm or mul:
            # TODO(synk): gc2gc / normalization / gamma-multiplied paths (n_fft
            # FFT based generalized cepstrum conversion) are not implemented.
            raise NotImplementedError("only gamma=0, norm=False, mul=False supported")
        if out_format == "complex":
            # TODO(synk): complex output (torch.polar) not implemented.
            raise NotImplementedError("complex output not supported")

        self.cep_order = cep_order
        self.half = fft_length // 2

        # mgc2mgc with out_alpha=0 reduces to a frequency transform with -alpha.
        A = freqt_matrix(cep_order, self.half, -alpha)        # (M+1, L/2+1), f64

        if out_format in (0, "db"):
            use_exp, scale, imag = False, 20.0 / math.log(10.0), False
        elif out_format in (1, "log-magnitude"):
            use_exp, scale, imag = False, 1.0, False
        elif out_format in (2, "magnitude"):
            use_exp, scale, imag = True, 1.0, False
        elif out_format in (3, "power"):
            use_exp, scale, imag = True, 2.0, False
        elif out_format in (4, "cycle"):
            use_exp, scale, imag = False, 1.0 / math.pi, True
        elif out_format in (5, "radian"):
            use_exp, scale, imag = False, 1.0, True
        elif out_format in (6, "degree"):
            use_exp, scale, imag = False, 180.0 / math.pi, True
        else:
            raise ValueError(f"out_format {out_format} is not supported.")

        F = rfft_basis(self.half, fft_length, imag)            # (L/2+1, L/2+1), f64

        # Fuse freqt matrix, rfft basis and formatter scale into one weight,
        # computed in float64 on the host, then cast to f32.
        W = scale * (A @ F)                                    # (M+1, L/2+1)

        # Contraction-dim alignment: pad to a multiple of 8 sublanes with zero
        # rows so the MXU operands sit on full tiles (no-op if already aligned).
        M1 = cep_order + 1
        self.m1_padded = _round_up(M1, 8)
        if self.m1_padded != M1:
            W = np.concatenate(
                [W, np.zeros((self.m1_padded - M1, W.shape[1]), dtype=W.dtype)],
                axis=0)

        self.W = jnp.asarray(W, dtype=jnp.float32)
        self.use_exp = use_exp
        self.scale = scale
        self.imag = imag
        self.out_dtype = jnp.dtype(out_dtype)
        # Keep A for the pure-JAX reference path.
        self._A_f32 = jnp.asarray(A, dtype=jnp.float32)
        self._fft_length = fft_length

    def __call__(self, mc):
        assert mc.shape[-1] == self.cep_order + 1, "dimension of cepstrum"
        lead = mc.shape[:-1]
        M1 = self.cep_order + 1
        M1p = self.m1_padded
        K = self.half + 1

        mc2 = mc.reshape(-1, M1).astype(jnp.float32)
        if M1p != M1:
            # Contraction-dim alignment only; the input is tiny (M1 << K).
            mc2 = jnp.pad(mc2, ((0, 0), (0, M1p - M1)))
        B = mc2.shape[0]

        TB = _choose_tile(B, M1p, K, self.out_dtype.itemsize)
        grid = (_cdiv(B, TB),)

        kernel = functools.partial(_mgc2sp_kernel, use_exp=self.use_exp)

        out = pl.pallas_call(
            kernel,
            out_shape=jax.ShapeDtypeStruct((B, K), self.out_dtype),
            grid=grid,
            in_specs=[
                pl.BlockSpec((TB, M1p), lambda i: (i, 0)),   # mel-cepstrum tile
                pl.BlockSpec((M1p, K), lambda i: (0, 0)),    # fused weight (resident)
            ],
            out_specs=pl.BlockSpec((TB, K), lambda i: (i, 0)),
            compiler_params=pltpu.CompilerParams(
                dimension_semantics=("parallel",),
                vmem_limit_bytes=_VMEM_LIMIT_BYTES,
            ),
        )(mc2, self.W)

        # No batch padding and no out[:B] slice: when B % TB != 0 the ragged
        # last block is handled by Pallas (out-of-range output rows dropped).
        return out.reshape(*lead, K)


# ----------------------------------------------------------------------------
# Reference (pure JAX) for sanity check
# ----------------------------------------------------------------------------
def _reference(mc, mod: MelGeneralizedCepstrumToSpectrum):
    c = jnp.matmul(mc.astype(jnp.float32), mod._A_f32)
    sp = jnp.fft.rfft(c, n=mod._fft_length, axis=-1)
    part = jnp.imag(sp) if mod.imag else jnp.real(sp)
    if mod.use_exp:
        return jnp.exp(mod.scale * part)
    return mod.scale * part


if __name__ == "__main__":
    cep_order = 15        # M -> mc has M+1 = 16 coefficients
    fft_length = 64       # L -> spectrum has L/2+1 = 33 bins
    alpha = 0.35

    key = jax.random.PRNGKey(0)

    # --- power format, float32 output ----------------------------------------
    batch, frames = 2, 8  # B = 16 rows total
    mc = 0.3 * jax.random.normal(key, (batch, frames, cep_order + 1), dtype=jnp.float32)
    mod = MelGeneralizedCepstrumToSpectrum(
        cep_order, fft_length, alpha=alpha, gamma=0.0,
        norm=False, mul=False, n_fft=512, out_format="power",
    )
    sp = jax.block_until_ready(mod(mc))
    assert sp.shape == (batch, frames, fft_length // 2 + 1), sp.shape
    np.testing.assert_allclose(np.asarray(sp), np.asarray(_reference(mc, mod)),
                               rtol=2e-4, atol=2e-5)

    # --- odd batch size: exercises the no-pad / no-slice path -----------------
    mc_odd = 0.3 * jax.random.normal(jax.random.PRNGKey(1),
                                     (3, 5, cep_order + 1), dtype=jnp.float32)
    sp_odd = jax.block_until_ready(mod(mc_odd))
    assert sp_odd.shape == (3, 5, fft_length // 2 + 1), sp_odd.shape
    np.testing.assert_allclose(np.asarray(sp_odd),
                               np.asarray(_reference(mc_odd, mod)),
                               rtol=2e-4, atol=2e-5)

    # --- log-magnitude with bf16 output (writeback-friendly format) -----------
    mod_lm = MelGeneralizedCepstrumToSpectrum(
        cep_order, fft_length, alpha=alpha, out_format="log-magnitude",
        out_dtype=jnp.bfloat16,
    )
    sp_lm = jax.block_until_ready(mod_lm(mc))
    np.testing.assert_allclose(np.asarray(sp_lm.astype(jnp.float32)),
                               np.asarray(_reference(mc, mod_lm)),
                               rtol=2e-2, atol=2e-2)

    print("KERNEL_OK")
</pallas_src>

<mosaic_0001>
module attributes {stable_mosaic.version = 11 : i64} {
  func.func @_mgc2sp_kernel(%arg0: i32, %arg1: memref<16x16xf32, #tpu.memory_space<vmem>>, %arg2: memref<16x33xf32, #tpu.memory_space<vmem>>, %arg3: memref<16x33xf32, #tpu.memory_space<vmem>>) attributes {dimension_semantics = [#tpu.dimension_semantics<parallel>], iteration_bounds = array<i64: 1>, scalar_prefetch = 0 : i64, scratch_operands = 0 : i64, tpu.core_type = #tpu.core_type<tc>, window_params = [{transform_indices = @transform_0, window_bounds = array<i64: 16, 16>}, {pipeline_mode = #tpu.pipeline_mode<synchronous>, transform_indices = @transform_1, window_bounds = array<i64: 16, 33>}, {transform_indices = @transform_2, window_bounds = array<i64: 16, 33>}]} {
    %c0 = arith.constant 0 : index
    %c0_0 = arith.constant 0 : index
    %0 = vector.load %arg1[%c0, %c0_0] : memref<16x16xf32, #tpu.memory_space<vmem>>, vector<16x16xf32>
    %c0_1 = arith.constant 0 : index
    %c0_2 = arith.constant 0 : index
    %1 = vector.load %arg2[%c0_1, %c0_2] : memref<16x33xf32, #tpu.memory_space<vmem>>, vector<16x33xf32>
    %cst = arith.constant dense<0.000000e+00> : vector<16x33xf32>
    %2 = tpu.matmul %0, %1, %cst {dimension_numbers = #tpu.dot_dimension_numbers<[1], [0], [0], [1], [0, 0, 1, 1], [], []>} : vector<16x16xf32>, vector<16x33xf32>, vector<16x33xf32> -> vector<16x33xf32>
    %3 = math.exp %2 : vector<16x33xf32>
    %c0_3 = arith.constant 0 : index
    %c0_4 = arith.constant 0 : index
    %4 = vector.load %arg3[%c0_3, %c0_4] : memref<16x33xf32, #tpu.memory_space<vmem>>, vector<16x33xf32>
    tpu.vector_store %arg3[%c0_3, %c0_4], %3 {strides = array<i32>} : memref<16x33xf32, #tpu.memory_space<vmem>>, vector<16x33xf32>,
    return
  }
  func.func @transform_0(%arg0: i32) -> (i32, i32) {
    %c0_i32 = arith.constant 0 : i32
    %c0_i32_0 = arith.constant 0 : i32
    return %arg0, %c0_i32 : i32, i32
  }
  func.func @transform_1(%arg0: i32) -> (i32, i32) {
    %c0_i32 = arith.constant 0 : i32
    %c0_i32_0 = arith.constant 0 : i32
    %c0_i32_1 = arith.constant 0 : i32
    return %c0_i32, %c0_i32_0 : i32, i32
  }
  func.func @transform_2(%arg0: i32) -> (i32, i32) {
    %c0_i32 = arith.constant 0 : i32
    %c0_i32_0 = arith.constant 0 : i32
    return %arg0, %c0_i32 : i32, i32
  }
}

</mosaic_0001>

<llo_original>
// kernel: tpu_custom_call.1
$region0: #{tpu_custom_call.1}
  #allocation0 [shape = 'u32[]', space=smem, size = 0x4, offset = 0x4, fixed_abs, tag = 'smem constant byte address 0x4 - core index']
  #allocation1 [shape = 'u32[144,128]{1,0:T(1,128)}', space=vmem, size = 0x12000, scoped, tag = 'internal scratch']
  %s0 = inlined_call_operand.hbm [shape: f32[16,16], index: 0, kind: input, shape index: {}]
  %s1 = inlined_call_operand.hbm [shape: f32[16,33], index: 1, kind: input, shape index: {}]
  %s2 = inlined_call_operand.hbm [shape: f32[16,33], index: 2, kind: output, shape index: {}]
  %s3 = sld [smem:[#allocation0]]
  $region26: #{tpu_custom_call.1} parent=0
    _
  %s5 = ssub.s32 1, %s3
  %s6 = scalar_select 0, %s5, %s3
  $region1: #{tpu_custom_call.1} parent=0
    #allocation2 [shape = 'u8[8192]{0}', space=vmem, size = 0x2000, scoped, tag = 'input window, operand 0, single buffered']
    #allocation3 [shape = 's32[1]{0}', space=sflag, size = 0x4, scoped, tag = 'scoped memory for tpu_custom_call.1']
    #allocation4 [shape = 's32[1]{0}', space=sflag, size = 0x4, scoped, tag = 'scoped memory for tpu_custom_call.1']
    #allocation5 [shape = 'u8[8192]{0}', space=vmem, size = 0x2000, scoped, tag = 'input window, operand 1, single buffered']
    #allocation6 [shape = 's32[1]{0}', space=sflag, size = 0x4, scoped, tag = 'scoped memory for tpu_custom_call.1']
    #allocation7 [shape = 'u8[8192]{0}', space=vmem, size = 0x2000, scoped, tag = 'output window, operand 0, single buffered']
    %7 = vsyncpa [#allocation3], 0
    %8 = vsyncpa [#allocation6], 0
    %9 = vsyncpa [#allocation4], 0
    // Predicated region
    $region2: #{tpu_custom_call.1} parent=1 // pred_check
      _
    $region3: #{tpu_custom_call.1} parent=1 // pred_check_branch
      %11 = sbr.rel (0) target = $region5
    $region4: #{tpu_custom_call.1} parent=1 // pred_region
      %s13 = ssub.s32 256, 256
      %14 = vsyncadd [#allocation3], %s13
      %s15 = sshll.u32 [#allocation2], 4
      %s16 = int_to_ptr.vmem [resolvable:$true] %s15
      %21 = dma.hbm_to_vmem [thread:$0]  %s0, 256, %s16, [#allocation3], 128, 128, 8
    $region5: #{tpu_custom_call.1} parent=1 // pred_fallthru
      _
    // Predicated region
    $region6: #{tpu_custom_call.1} parent=1 // pred_check
      _
    $region7: #{tpu_custom_call.1} parent=1 // pred_check_branch
      %23 = sbr.rel (0) target = $region9
    $region8: #{tpu_custom_call.1} parent=1 // pred_region
      %s25 = ssub.s32 256, 256
      %26 = vsyncadd [#allocation6], %s25
      %s27 = sshll.u32 [#allocation5], 4
      %s28 = int_to_ptr.vmem [resolvable:$true] %s27
      %33 = dma.hbm_to_vmem [thread:$0]  %s1, 256, %s28, [#allocation6], 128, 128, 8
    $region9: #{tpu_custom_call.1} parent=1 // pred_fallthru
      _
    // Predicated region
    $region10: #{tpu_custom_call.1} parent=1 // pred_check
      _
    $region11: #{tpu_custom_call.1} parent=1 // pred_check_branch
      %35 = sbr.rel (0) target = $region13
    $region12: #{tpu_custom_call.1} parent=1 // pred_region
      %36 = dma.done [#allocation3], 256
    $region13: #{tpu_custom_call.1} parent=1 // pred_fallthru
      _
    // Predicated region
    $region14: #{tpu_custom_call.1} parent=1 // pred_check
      _
    $region15: #{tpu_custom_call.1} parent=1 // pred_check_branch
      %38 = sbr.rel (0) target = $region17
    $region16: #{tpu_custom_call.1} parent=1 // pred_region
      %39 = dma.done [#allocation6], 256
    $region17: #{tpu_custom_call.1} parent=1 // pred_fallthru
      _
    %v40 = vld [vmem:[#allocation2] sm:$0xff]
    %v41 = vld [vmem:[#allocation2 + $0x8] sm:$0xff]
    %v42 = vld [vmem:[#allocation5] sm:$0xff]
    %v43 = vld [vmem:[#allocation5 + $0x8] sm:$0xff]
    %vm44 = vcmask 130048
    %v46 = vsel %vm44, %v40, 0
    %v49 = vsel %vm44, %v41, 0
    %51 = vmatprep.subr.mxu0 0.0
    %52 = vmatpush1.msra.mxu0 0.0
    %53 = vmatprep.subr.mxu0 0.0
    %54 = vmatpush1.msra.mxu0 0.0
    %55 = vmatprep.subr.mxu0 0.0
    %56 = vmatpush1.msra.mxu0 0.0
    %57 = vmatprep.subr.mxu0 0.0
    %58 = vmatpush1.msra.mxu0 0.0
    %59 = vmatprep.subr.mxu0 0.0
    %60 = vmatpush1.msra.mxu0 0.0
    %61 = vmatprep.subr.mxu0 0.0
    %62 = vmatpush1.msra.mxu0 0.0
    %63 = vmatprep.subr.mxu0 0.0
    %64 = vmatpush1.msra.mxu0 0.0
    %65 = vmatprep.subr.mxu0 0.0
    %66 = vmatpush1.msra.mxu0 0.0
    %67 = vmatprep.subr.mxu0 0.0
    %68 = vmatpush1.msra.mxu0 0.0
    %69 = vmatprep.subr.mxu0 0.0
    %70 = vmatpush1.msra.mxu0 0.0
    %71 = vmatprep.subr.mxu0 0.0
    %72 = vmatpush1.msra.mxu0 0.0
    %73 = vmatprep.subr.mxu0 0.0
    %74 = vmatpush1.msra.mxu0 0.0
    %75 = vmatprep.subr.mxu0 0.0
    %76 = vmatpush1.msra.mxu0 0.0
    %77 = vmatprep.subr.mxu0 0.0
    %78 = vmatpush1.msra.mxu0 0.0
    %79 = vmatprep.subr.mxu0 0.0
    %80 = vmatpush1.msra.mxu0 %v43
    %81 = vmatprep.subr.mxu0 0.0
    %82 = vmatpush1.msra.mxu0 %v42
    %83 = vmatprep.subr.mxu0 0.0
    %84 = vmatpush2.msra.mxu0 0.0
    %85 = vmatprep.subr.mxu0 0.0
    %86 = vmatpush2.msra.mxu0 0.0
    %87 = vmatprep.subr.mxu0 0.0
    %88 = vmatpush2.msra.mxu0 0.0
    %89 = vmatprep.subr.mxu0 0.0
    %90 = vmatpush2.msra.mxu0 0.0
    %91 = vmatprep.subr.mxu0 0.0
    %92 = vmatpush2.msra.mxu0 0.0
    %93 = vmatprep.subr.mxu0 0.0
    %94 = vmatpush2.msra.mxu0 0.0
    %95 = vmatprep.subr.mxu0 0.0
    %96 = vmatpush2.msra.mxu0 0.0
    %97 = vmatprep.subr.mxu0 0.0
    %98 = vmatpush2.msra.mxu0 0.0
    %99 = vmatprep.subr.mxu0 0.0
    %100 = vmatpush2.msra.mxu0 0.0
    %101 = vmatprep.subr.mxu0 0.0
    %102 = vmatpush2.msra.mxu0 0.0
    %103 = vmatprep.subr.mxu0 0.0
    %104 = vmatpush2.msra.mxu0 0.0
    %105 = vmatprep.subr.mxu0 0.0
    %106 = vmatpush2.msra.mxu0 0.0
    %107 = vmatprep.subr.mxu0 0.0
    %108 = vmatpush2.msra.mxu0 0.0
    %109 = vmatprep.subr.mxu0 0.0
    %110 = vmatpush2.msra.mxu0 0.0
    %111 = vmatprep.subr.mxu0 0.0
    %112 = vmatpush2.msra.mxu0 0.0
    %113 = vmatprep.subr.mxu0 0.0
    %114 = vmatpush2.msra.mxu0 0.0
    %115 = vmatprep.mubr.f32.mxu0 0.0
    %116 = vmatmul.mubr.f32.gmra.mxu0 %v46
    %v117 = vpop.f32.mrf.mxu0
    %v118 = vadd.f32 0.0, %v117
    %v119 = vpop.f32.mrf.mxu0
    %120 = vmatprep.mubr.f32.mxu0 0.0
    %121 = vmatmul.mubr.f32.gmra.mxu0 %v49
    %v122 = vpop.f32.mrf.mxu0
    %v123 = vadd.f32 0.0, %v122
    %v124 = vpop.f32.mrf.mxu0
    %125 = vdwg.mxu0
    %v126 = vmul.f32 %v118, 1.442695
    %v127 = vpow.pop %v126
    %v128 = vmul.f32 %v123, 1.442695
    %v129 = vpow.pop %v128
    %vm130 = vcmask 269312
    %131 = vst.msk [vmem:[#allocation7] sm:$0xff] %vm130, %v127
    %132 = vst.msk [vmem:[#allocation7 + $0x8] sm:$0xff] %vm130, %v129
    // Predicated region
    $region18: #{tpu_custom_call.1} parent=1 // pred_check
      _
    $region19: #{tpu_custom_call.1} parent=1 // pred_check_branch
      %134 = sbr.rel (0) target = $region21
    $region20: #{tpu_custom_call.1} parent=1 // pred_region
      %s136 = ssub.s32 256, 256
      %137 = vsyncadd [#allocation4], %s136
      %s138 = sshll.u32 [#allocation7], 4
      %s139 = int_to_ptr.vmem [resolvable:$true] %s138
      %144 = dma.vmem_to_hbm [thread:$0]  %s139, 256, %s2, [#allocation4], 128, 128, 8
    $region21: #{tpu_custom_call.1} parent=1 // pred_fallthru
      _
    // Predicated region
    $region22: #{tpu_custom_call.1} parent=1 // pred_check
      _
    $region23: #{tpu_custom_call.1} parent=1 // pred_check_branch
      %146 = sbr.rel (0) target = $region25
    $region24: #{tpu_custom_call.1} parent=1 // pred_region
      %147 = dma.done [#allocation4], 256
    $region25: #{tpu_custom_call.1} parent=1 // pred_fallthru
      _
    %148 = vsyncpa [#allocation3], 1
    %149 = vsyncpa [#allocation6], 1
    %150 = vsyncpa [#allocation4], 1

</llo_original>
